<compile_context>
chip_gen: v7x
topology: tpu7x:2x2x1
jax: 0.10.0
libtpu: 0.0.40
codegen_flags: <defaults>
</compile_context>

<pallas_src>
import jax
import jax.numpy as jnp
from jax.experimental import pallas as pl
from jax.experimental.pallas import tpu as pltpu


def _make_mycs_kernel(inv_temp: float, label_smoothing: float,
                      n_total_rows: int, block_rows: int, needs_mask: bool):
    inv_temp = float(inv_temp)
    label_smoothing = float(label_smoothing)

    def kernel(logits_ref, targets_ref, out_ref):
        # (TB, C) tile; cast to f32 inside the kernel (bf16 DMA stays bf16).
        x = logits_ref[...].astype(jnp.float32) * jnp.float32(inv_temp)
        tb, c = x.shape

        # Numerically stable log_softmax along the class (lane) axis.
        m = jnp.max(x, axis=-1, keepdims=True)
        shifted = x - m
        lse = jnp.log(jnp.sum(jnp.exp(shifted), axis=-1, keepdims=True))
        logp = shifted - lse                                         # (TB, C)

        # Smoothed CE without materializing true_dist.
        tgt = targets_ref[...]                                       # (TB, 1) int32
        class_ids = jax.lax.broadcasted_iota(jnp.int32, (tb, c), 1)
        one_hot = class_ids == tgt                                   # (TB, C) bool

        s_all = jnp.sum(logp, axis=-1, keepdims=True)                # (TB, 1)
        s_tgt = jnp.sum(jnp.where(one_hot, logp, 0.0), axis=-1, keepdims=True)

        off_w = jnp.float32(label_smoothing / (c - 1))
        on_w = jnp.float32(1.0 - label_smoothing)
        per_row = -off_w * (s_all - s_tgt) - on_w * s_tgt            # (TB, 1)

        if needs_mask:
            # Only emitted when the last block is a padded (ragged) tail.
            row = (pl.program_id(0) * block_rows
                   + jax.lax.broadcasted_iota(jnp.int32, (tb, 1), 0))
            per_row = jnp.where(row < n_total_rows, per_row, 0.0)

        partial = jnp.sum(per_row)                                   # scalar block sum
        # Lane-dense per-block partial (broadcast across the 128-lane output block).
        out_ref[...] = jnp.full(out_ref.shape, partial, dtype=jnp.float32)

    return kernel


def _pick_block_rows(B: int, C: int, itemsize: int) -> int:
    """Largest multiple-of-8 tile <= ~4 MiB/buffer that (ideally) divides B."""
    budget = 4 * 1024 * 1024
    target = min(1024, max(8, budget // max(1, C * itemsize)))
    target = max(8, (target // 8) * 8)
    if B <= target:
        return B                      # single full-batch block (no pad, no mask)
    for cand in range(target, 7, -8):  # prefer a divisor of B -> no pad copy
        if B % cand == 0:
            return cand
    return target                      # fall back: ragged tail, masked in-kernel


def mycs_loss(logits, targets, temperature=1.0, label_smoothing=0.1, block_rows=None):
    """JAX/Pallas equivalent of the PyTorch `mycs.forward`.

    logits:  [B, C] float array (f32 or bf16; bf16 halves HBM traffic)
    targets: [B]    int array of class indices
    returns: scalar float32 loss
    """
    B, C = logits.shape
    itemsize = jnp.dtype(logits.dtype).itemsize

    if block_rows is None:
        block_rows = _pick_block_rows(B, C, itemsize)
    else:
        block_rows = int(block_rows)
        if block_rows >= B:
            block_rows = B            # full-batch block is always legal
        else:
            block_rows = max(8, (block_rows // 8) * 8)

    num_blocks = pl.cdiv(B, block_rows)
    b_padded = num_blocks * block_rows
    needs_mask = b_padded != B

    tgt2d = targets.astype(jnp.int32).reshape(-1, 1)
    if needs_mask:
        logits_p = jnp.pad(logits, ((0, b_padded - B), (0, 0)))
        tgt_p = jnp.pad(tgt2d, ((0, b_padded - B), (0, 0)))
    else:
        logits_p = logits
        tgt_p = tgt2d

    kernel = _make_mycs_kernel(1.0 / float(temperature), float(label_smoothing),
                               B, block_rows, needs_mask)

    partials = pl.pallas_call(
        kernel,
        out_shape=jax.ShapeDtypeStruct((num_blocks, 1, 128), jnp.float32),
        grid=(num_blocks,),
        in_specs=[
            pl.BlockSpec((block_rows, C), lambda i: (i, 0)),   # logits tile
            pl.BlockSpec((block_rows, 1), lambda i: (i, 0)),   # targets tile
        ],
        out_specs=pl.BlockSpec((1, 1, 128), lambda i: (i, 0, 0)),
        compiler_params=pltpu.CompilerParams(
            dimension_semantics=("parallel",)),
    )(logits_p, tgt_p)

    # Final mean: divide by the TRUE batch size once, via a multiply.
    return jnp.sum(partials[:, 0, 0]) * jnp.float32(1.0 / B)


def _reference(logits, targets, temperature=1.0, label_smoothing=0.1):
    x = logits.astype(jnp.float32) / temperature
    B, C = x.shape
    logp = jax.nn.log_softmax(x, axis=-1)
    true_dist = jnp.full_like(x, label_smoothing / (C - 1))
    true_dist = true_dist.at[jnp.arange(B), targets].set(1.0 - label_smoothing)
    return jnp.mean(jnp.sum(-true_dist * logp, axis=-1))


if __name__ == "__main__":
    key = jax.random.PRNGKey(0)
    k1, k2, k3, k4, k5, k6 = jax.random.split(key, 6)

    # Case 1: small classification head (single block), f32.
    B1, C1 = 8, 16
    logits1 = jax.random.normal(k1, (B1, C1), dtype=jnp.float32)
    targets1 = jax.random.randint(k2, (B1,), 0, C1, dtype=jnp.int32)
    out1 = jax.block_until_ready(
        mycs_loss(logits1, targets1, temperature=1.0, label_smoothing=0.1))
    ref1 = _reference(logits1, targets1, temperature=1.0, label_smoothing=0.1)
    assert jnp.allclose(out1, ref1, atol=1e-5, rtol=1e-5), (out1, ref1)

    # Case 2: RAF-DB style (7 classes), bf16 logits, multi-block grid with a
    # masked ragged last block (B=20, TB=8 -> 3 blocks, 4 padded rows).
    B2, C2 = 20, 7
    logits2 = jax.random.normal(k3, (B2, C2), dtype=jnp.float32).astype(jnp.bfloat16)
    targets2 = jax.random.randint(k4, (B2,), 0, C2, dtype=jnp.int32)
    out2 = jax.block_until_ready(
        mycs_loss(logits2, targets2, temperature=2.0, label_smoothing=0.1, block_rows=8))
    ref2 = _reference(logits2, targets2, temperature=2.0, label_smoothing=0.1)
    assert jnp.allclose(out2, ref2, atol=1e-4, rtol=1e-4), (out2, ref2)

    # Case 3: multi-block grid where the tile divides B (no pad, no mask), f32.
    B3, C3 = 64, 7
    logits3 = jax.random.normal(k5, (B3, C3), dtype=jnp.float32)
    targets3 = jax.random.randint(k6, (B3,), 0, C3, dtype=jnp.int32)
    out3 = jax.block_until_ready(
        mycs_loss(logits3, targets3, temperature=1.5, label_smoothing=0.2, block_rows=16))
    ref3 = _reference(logits3, targets3, temperature=1.5, label_smoothing=0.2)
    assert jnp.allclose(out3, ref3, atol=1e-5, rtol=1e-5), (out3, ref3)

    print("KERNEL_OK")
</pallas_src>

<mosaic_0001>
module attributes {stable_mosaic.version = 11 : i64} {
  func.func @kernel(%arg0: i32, %arg1: memref<8x16xf32, #tpu.memory_space<vmem>>, %arg2: memref<8x1xi32, #tpu.memory_space<vmem>>, %arg3: memref<1x1x128xf32, #tpu.memory_space<vmem>>) attributes {dimension_semantics = [#tpu.dimension_semantics<parallel>], iteration_bounds = array<i64: 1>, scalar_prefetch = 0 : i64, scratch_operands = 0 : i64, tpu.core_type = #tpu.core_type<tc>, window_params = [{transform_indices = @transform_0, window_bounds = array<i64: 8, 16>}, {transform_indices = @transform_1, window_bounds = array<i64: 8, 1>}, {transform_indices = @transform_2, window_bounds = array<i64: 1, 1, 128>}]} {
    %c0 = arith.constant 0 : index
    %c0_0 = arith.constant 0 : index
    %0 = vector.load %arg1[%c0, %c0_0] : memref<8x16xf32, #tpu.memory_space<vmem>>, vector<8x16xf32>
    %cst = arith.constant 1.000000e+00 : f32
    %1 = vector.broadcast %cst : f32 to vector<8x16xf32>
    %2 = arith.mulf %0, %1 : vector<8x16xf32>
    %cst_1 = arith.constant dense<0xFF800000> : vector<8xf32>
    %3 = vector.multi_reduction <maximumf>, %2, %cst_1 [1] : vector<8x16xf32> to vector<8xf32>
    %4 = vector.shape_cast %3 : vector<8xf32> to vector<8x1xf32>
    %5 = vector.broadcast %4 : vector<8x1xf32> to vector<8x16xf32>
    %6 = arith.subf %2, %5 : vector<8x16xf32>
    %7 = math.exp %6 : vector<8x16xf32>
    %cst_2 = arith.constant dense<0.000000e+00> : vector<8xf32>
    %8 = vector.multi_reduction <add>, %7, %cst_2 [1] : vector<8x16xf32> to vector<8xf32>
    %9 = vector.shape_cast %8 : vector<8xf32> to vector<8x1xf32>
    %10 = math.log %9 : vector<8x1xf32>
    %11 = vector.broadcast %10 : vector<8x1xf32> to vector<8x16xf32>
    %12 = arith.subf %6, %11 : vector<8x16xf32>
    %c0_3 = arith.constant 0 : index
    %c0_4 = arith.constant 0 : index
    %13 = vector.load %arg2[%c0_3, %c0_4] : memref<8x1xi32, #tpu.memory_space<vmem>>, vector<8x1xi32>
    %14 = tpu.iota {dimensions = array<i32: 1>} : vector<8x16xi32>
    %15 = vector.broadcast %13 : vector<8x1xi32> to vector<8x16xi32>
    %16 = arith.cmpi eq, %14, %15 : vector<8x16xi32>
    %cst_5 = arith.constant dense<0.000000e+00> : vector<8xf32>
    %17 = vector.multi_reduction <add>, %12, %cst_5 [1] : vector<8x16xf32> to vector<8xf32>
    %18 = vector.shape_cast %17 : vector<8xf32> to vector<8x1xf32>
    %cst_6 = arith.constant 0.000000e+00 : f32
    %19 = vector.broadcast %cst_6 : f32 to vector<8x16xf32>
    %20 = arith.select %16, %12, %19 : vector<8x16xi1>, vector<8x16xf32>
    %cst_7 = arith.constant dense<0.000000e+00> : vector<8xf32>
    %21 = vector.multi_reduction <add>, %20, %cst_7 [1] : vector<8x16xf32> to vector<8xf32>
    %22 = vector.shape_cast %21 : vector<8xf32> to vector<8x1xf32>
    %cst_8 = arith.constant 0.000000e+00 : f32
    %cst_9 = arith.constant 0.00666666683 : f32
    %23 = arith.subf %cst_8, %cst_9 : f32
    %24 = arith.subf %18, %22 : vector<8x1xf32>
    %25 = vector.broadcast %23 : f32 to vector<8x1xf32>
    %26 = arith.mulf %25, %24 : vector<8x1xf32>
    %cst_10 = arith.constant 0.899999976 : f32
    %27 = vector.broadcast %cst_10 : f32 to vector<8x1xf32>
    %28 = arith.mulf %27, %22 : vector<8x1xf32>
    %29 = arith.subf %26, %28 : vector<8x1xf32>
    %30 = vector.shape_cast %29 : vector<8x1xf32> to vector<1x8x1xf32>
    %cst_11 = arith.constant dense<0.000000e+00> : vector<1xf32>
    %31 = vector.multi_reduction <add>, %30, %cst_11 [1, 2] : vector<1x8x1xf32> to vector<1xf32>
    %32 = vector.shape_cast %31 : vector<1xf32> to vector<1x1x1xf32>
    %33 = vector.extract %32[0, 0, 0] : f32 from vector<1x1x1xf32>
    %34 = vector.broadcast %33 : f32 to vector<1x1x128xf32>
    %c0_12 = arith.constant 0 : index
    %c0_13 = arith.constant 0 : index
    %c0_14 = arith.constant 0 : index
    %35 = vector.load %arg3[%c0_12, %c0_13, %c0_14] : memref<1x1x128xf32, #tpu.memory_space<vmem>>, vector<1x1x128xf32>
    tpu.vector_store %arg3[%c0_12, %c0_13, %c0_14], %34 {strides = array<i32>} : memref<1x1x128xf32, #tpu.memory_space<vmem>>, vector<1x1x128xf32>,
    return
  }
  func.func @transform_0(%arg0: i32) -> (i32, i32) {
    %c0_i32 = arith.constant 0 : i32
    %c0_i32_0 = arith.constant 0 : i32
    return %arg0, %c0_i32 : i32, i32
  }
  func.func @transform_1(%arg0: i32) -> (i32, i32) {
    %c0_i32 = arith.constant 0 : i32
    %c0_i32_0 = arith.constant 0 : i32
    return %arg0, %c0_i32 : i32, i32
  }
  func.func @transform_2(%arg0: i32) -> (i32, i32, i32) {
    %c0_i32 = arith.constant 0 : i32
    %c0_i32_0 = arith.constant 0 : i32
    %c0_i32_1 = arith.constant 0 : i32
    return %arg0, %c0_i32, %c0_i32_0 : i32, i32, i32
  }
}

</mosaic_0001>

<llo_original>
// kernel: tpu_custom_call.1
$region0: #{tpu_custom_call.1}
  #allocation0 [shape = 'u32[]', space=smem, size = 0x4, offset = 0x4, fixed_abs, tag = 'smem constant byte address 0x4 - core index']
  #allocation1 [shape = 'u32[144,128]{1,0:T(1,128)}', space=vmem, size = 0x12000, scoped, tag = 'internal scratch']
  %s0 = inlined_call_operand.vmem [shape: f32[8,16], index: 0, kind: input, shape index: {}]
  %s1 = inlined_call_operand.vmem [shape: s32[8,1], index: 1, kind: input, shape index: {}]
  %s2 = inlined_call_operand.hbm [shape: f32[1,1,128], index: 2, kind: output, shape index: {}]
  %s3 = sld [smem:[#allocation0]]
  $region18: #{tpu_custom_call.1} parent=0
    _
  %s5 = ssub.s32 1, %s3
  %s6 = scalar_select 0, %s5, %s3
  $region1: #{tpu_custom_call.1} parent=0
    #allocation2 [shape = 'u8[512]{0}', space=vmem, size = 0x400, scoped, tag = 'output window, operand 0, single buffered']
    #allocation3 [shape = 's32[1]{0}', space=sflag, size = 0x4, scoped, tag = 'scoped memory for tpu_custom_call.1']
    %7 = vsyncpa [#allocation3], 0
    // Predicated region
    $region2: #{tpu_custom_call.1} parent=1 // pred_check
      _
    $region3: #{tpu_custom_call.1} parent=1 // pred_check_branch
      %9 = sbr.rel (0) target = $region5
    $region4: #{tpu_custom_call.1} parent=1 // pred_region
      _
    $region5: #{tpu_custom_call.1} parent=1 // pred_fallthru
      _
    // Predicated region
    $region6: #{tpu_custom_call.1} parent=1 // pred_check
      _
    $region7: #{tpu_custom_call.1} parent=1 // pred_check_branch
      %11 = sbr.rel (0) target = $region9
    $region8: #{tpu_custom_call.1} parent=1 // pred_region
      _
    $region9: #{tpu_custom_call.1} parent=1 // pred_fallthru
      _
    %v12 = vld [vmem:[%s0] sm:$0xff]
    %vm13 = vcmask 130048
    %v14 = vsel %vm13, %v12, -inf
    %15 = vmax.xlane.f32.xlu0 %v14
    %v16 = vpop.xlane.xlu0 %15
    %v17 = vsub.f32 %v12, %v16
    %v18 = vmul.f32 %v17, 1.442695
    %v19 = vpow.pop %v18
    %v20 = vsel %vm13, %v19, 0.0
    %21 = vadd.xlane.f32.xlu0 %v20
    %v22 = vpop.xlane.xlu0 %21
    %v23 = vlog2.pop %v22
    %v24 = vmul.f32 %v23, 0.6931472
    %v25 = vsub.f32 %v17, %v24
    %v26 = vld [vmem:[%s1] sm:$0xff]
    %v27 = vlaneseq
    %v28 = vand.u32 %v27, 127
    %29 = vset.pattern.permute.xlu0 0
    %30 = vperm.xlu0 %29, %v26
    %v31 = vpop.permute.xlu0 %30
    %vm32 = vcmp.eq.s32.totalorder %v28, %v31
    %v33 = vsel %vm13, %v25, 0.0
    %34 = vadd.xlane.f32.xlu0 %v33
    %v35 = vpop.xlane.xlu0 %34
    %v36 = vsel %vm32, %v25, 0.0
    %v37 = vsel %vm13, %v36, 0.0
    %38 = vadd.xlane.f32.xlu0 %v37
    %v39 = vpop.xlane.xlu0 %38
    %v40 = vsub.f32 %v35, %v39
    %v41 = vmul.f32 %v40, -0.006666667
    %v42 = vmul.f32 %v39, 0.9
    %v43 = vsub.f32 %v41, %v42
    %vm44 = vcmask 7168
    %v45 = vsel %vm44, %v43, 0.0
    %46 = vadd.xlane.f32.xlu0 %v45
    %v47 = vpop.xlane.xlu0 %46
    %v48 = vrot.slane %v47, 4
    %v49 = vadd.f32 %v47, %v48
    %v50 = vrot.slane %v49, 2
    %v51 = vadd.f32 %v49, %v50
    %v52 = vrot.slane %v51, 1
    %v53 = vadd.f32 %v51, %v52
    %s54 = vtos %v53
    %v55 = vstv %s54
    %56 = vst [vmem:[#allocation2] sm:$0x1] %v55
    // Predicated region
    $region10: #{tpu_custom_call.1} parent=1 // pred_check
      _
    $region11: #{tpu_custom_call.1} parent=1 // pred_check_branch
      %58 = sbr.rel (0) target = $region13
    $region12: #{tpu_custom_call.1} parent=1 // pred_region
      %s60 = ssub.s32 16, 16
      %61 = vsyncadd [#allocation3], %s60
      %s63 = sshll.u32 [#allocation2], 4
      %s64 = int_to_ptr.vmem [resolvable:$true] %s63
      %66 = dma.vmem_to_hbm [thread:$0]  %s64, 16, %s2, [#allocation3]
    $region13: #{tpu_custom_call.1} parent=1 // pred_fallthru
      _
    // Predicated region
    $region14: #{tpu_custom_call.1} parent=1 // pred_check
      _
    $region15: #{tpu_custom_call.1} parent=1 // pred_check_branch
      %68 = sbr.rel (0) target = $region17
    $region16: #{tpu_custom_call.1} parent=1 // pred_region
      %69 = dma.done [#allocation3], 16
    $region17: #{tpu_custom_call.1} parent=1 // pred_fallthru
      _
    %70 = vsyncpa [#allocation3], 1

</llo_original>
